<compile_context>
chip_gen: v6e
topology: v6e:2x2x1
jax: 0.10.0
libtpu: 0.0.40
codegen_flags: <defaults>
</compile_context>

<pallas_src>
import math
import functools

import jax
import jax.numpy as jnp
from jax.experimental import pallas as pl
from jax.experimental.pallas import tpu as pltpu


_F32 = 4
_BF16 = 2
_MIN_VMEM = 32 * 1024 * 1024
_FALLBACK_CAP = 48 * 1024 * 1024      # safe for v7x (64 MiB physical per TC)


def _vmem_cap() -> int:
    """85% of physical VMEM (headroom for Mosaic internal scratch)."""
    try:
        info = pltpu.get_tpu_info()
        phys = getattr(info, "vmem_capacity_bytes", None)
        if phys:
            return int(0.85 * int(phys))
    except Exception:
        pass
    return _FALLBACK_CAP


def _pick_tile(n: int, target: int) -> int:
    """Largest tile <= target dividing n, preferring multiples of 8."""
    if n <= target:
        return n
    start = target - (target % 8)
    for cand in range(start, 7, -8):
        if n % cand == 0:
            return cand
    for cand in range(target, 0, -1):
        if n % cand == 0:
            return cand
    return n


def _vmem_limit(needed: int, cap: int) -> int:
    return int(min(cap, max(_MIN_VMEM, needed)))


def _spec(shape, index_map, *, single_buffer=False):
    """BlockSpec; grid-invariant blocks are single-buffered when supported."""
    if single_buffer:
        try:
            return pl.BlockSpec(shape, index_map, pipeline_mode=pl.Buffered(1))
        except Exception:
            pass
    return pl.BlockSpec(shape, index_map)


# ---------------------------------------------------------------------------
# Kernel 1: fused QKV projection   qkv = x @ [Wq|Wk|Wv] + [bq|bk|bv]
# ---------------------------------------------------------------------------
def qkv_proj_kernel(x_ref, wqkv_ref, bqkv_ref, qkv_ref):
    x = x_ref[...].astype(jnp.bfloat16)                                # (Tr, D)
    qkv = jnp.dot(x, wqkv_ref[...], preferred_element_type=jnp.float32)
    qkv = qkv + bqkv_ref[...]
    qkv_ref[...] = qkv.astype(qkv_ref.dtype)                           # (Tr, 3D)


# ---------------------------------------------------------------------------
# Kernel 2: per-head attention + out-proj + LN1 + FFN + LN2
# ---------------------------------------------------------------------------
def attn_ffn_kernel(x_ref, q_ref, k_ref, v_ref,
                    wo_ref, bo_ref, g1_ref, be1_ref,
                    w1_ref, b1_ref, w2_ref, b2_ref,
                    g2_ref, be2_ref, o_ref,
                    *, num_heads: int, head_dim: int):
    x = x_ref[...].astype(jnp.float32)                                 # (Tq, D)
    tq, d_model = x.shape
    scale = 1.0 / math.sqrt(head_dim)

    # Per-head loop: live intermediate bounded to (Tq, S); out-projection is
    # accumulated into the (Tq, D) f32 carry via the MXU.
    def head_body(h, att_acc):
        qh = q_ref[h]                                                  # (Tq, dh) bf16
        kh = k_ref[h]                                                  # (S,  dh) bf16
        vh = v_ref[h]                                                  # (S,  dh) bf16
        s = jax.lax.dot_general(qh, kh, (((1,), (1,)), ((), ())),
                                preferred_element_type=jnp.float32) * scale  # (Tq, S)
        s = s - jnp.max(s, axis=-1, keepdims=True)
        p = jnp.exp(s)
        p = p * pl.reciprocal(jnp.sum(p, axis=-1, keepdims=True), approx=True)
        oh = jnp.dot(p.astype(jnp.bfloat16), vh,
                     preferred_element_type=jnp.float32)               # (Tq, dh)
        return att_acc + jnp.dot(oh.astype(jnp.bfloat16), wo_ref[h],
                                 preferred_element_type=jnp.float32)   # (Tq, D)

    att = jax.lax.fori_loop(0, num_heads, head_body,
                            jnp.zeros((tq, d_model), jnp.float32))
    att = att + bo_ref[...]

    def layer_norm(y, gamma, beta, eps=1e-5):
        # one-pass variance: E[x^2] - mu^2 (one fewer cross-lane reduction)
        mu = jnp.mean(y, axis=-1, keepdims=True)
        ms = jnp.mean(y * y, axis=-1, keepdims=True)
        var = ms - mu * mu
        return (y - mu) * jax.lax.rsqrt(var + eps) * gamma + beta

    # dropout1 == identity (inference)
    x1 = layer_norm(att + x, g1_ref[...], be1_ref[...])                # (Tq, D)

    # feed-forward: Linear(D, d_ff) -> ReLU -> Linear(d_ff, D)
    h1 = jnp.dot(x1.astype(jnp.bfloat16), w1_ref[...],
                 preferred_element_type=jnp.float32) + b1_ref[...]
    h1 = jnp.maximum(h1, 0.0)
    ff = jnp.dot(h1.astype(jnp.bfloat16), w2_ref[...],
                 preferred_element_type=jnp.float32) + b2_ref[...]

    # dropout2 == identity (inference)
    x2 = layer_norm(ff + x1, g2_ref[...], be2_ref[...])
    o_ref[0] = x2.astype(o_ref.dtype)


# ---------------------------------------------------------------------------
# Wrapper
# ---------------------------------------------------------------------------
def transformer_encoder_layer(x, params, *, num_heads,
                              row_tile_target=512, q_tile_target=256):
    B, S, D = x.shape
    H = num_heads
    dh = D // H
    d_ff = params["w_ff1"].shape[1]
    cdt = jnp.bfloat16   # MXU compute dtype (f32 accumulation)
    cap = _vmem_cap()
    if cap > 80 * 1024 * 1024:          # v5e / v6e: 128 MiB physical -> bigger tiles
        row_tile_target = max(row_tile_target, 1024)
        q_tile_target = max(q_tile_target, 512)

    # Fuse QKV weights once; matmul weights in bf16 (biases / LN stay f32).
    wqkv = jnp.concatenate([params["wq"], params["wk"], params["wv"]], axis=1).astype(cdt)
    bqkv = jnp.concatenate([params["bq"], params["bk"], params["bv"]], axis=1).astype(jnp.float32)
    wo_h = params["wo"].astype(cdt).reshape(H, dh, D)     # head-major out-projection
    w1 = params["w_ff1"].astype(cdt)
    w2 = params["w_ff2"].astype(cdt)

    # ------------------ kernel 1: fused QKV projection ------------------
    rows = B * S
    tr = _pick_tile(rows, row_tile_target)
    x2d = x.reshape(rows, D)

    k1_bytes = (2 * tr * D * _F32                  # x tile (double-buffered)
                + D * 3 * D * _BF16                # wqkv (single-buffered)
                + 3 * D * _F32                     # bqkv
                + 2 * tr * 3 * D * _BF16           # output tile
                + tr * 3 * D * _F32)               # f32 intermediate
    qkv = pl.pallas_call(
        qkv_proj_kernel,
        out_shape=jax.ShapeDtypeStruct((rows, 3 * D), cdt),
        grid_spec=pltpu.PrefetchScalarGridSpec(
            num_scalar_prefetch=0,
            grid=(rows // tr,),
            in_specs=[
                pl.BlockSpec((tr, D), lambda i: (i, 0)),
                _spec((D, 3 * D), lambda i: (0, 0), single_buffer=True),
                _spec((1, 3 * D), lambda i: (0, 0), single_buffer=True),
            ],
            out_specs=pl.BlockSpec((tr, 3 * D), lambda i: (i, 0)),
        ),
        compiler_params=pltpu.CompilerParams(
            dimension_semantics=("parallel",),
            vmem_limit_bytes=_vmem_limit(int(1.25 * k1_bytes) + (4 << 20), cap)),
        cost_estimate=pl.CostEstimate(
            flops=int(2 * rows * D * 3 * D),
            transcendentals=0,
            bytes_accessed=int(rows * D * 4 + D * 3 * D * 2 + rows * 3 * D * 2)),
    )(x2d, wqkv, bqkv)

    # One transpose of the 5-D array (was 3 separate transposes):
    # (B, S, 3, H, dh) -> (3, B, H, S, dh); the same buffer feeds q/k/v specs.
    qkv_t = jnp.transpose(qkv.reshape(B, S, 3, H, dh), (2, 0, 3, 1, 4))

    # ------------------ kernel 2: attention + FFN ------------------
    # Keep both TensorCores busy on v7x when B == 1.
    if B == 1 and S >= 16:
        q_tile_target = min(q_tile_target, S // 2)

    def k2_budget(tq_):
        blocks = (2 * tq_ * D * _F32                    # x tile
                  + 2 * H * tq_ * dh * _BF16            # q tile
                  + 2 * 2 * H * S * dh * _BF16          # k, v (full seq)
                  + D * D * _BF16                       # Wo (single-buffered)
                  + 2 * D * d_ff * _BF16                # W1 + W2 (single-buffered)
                  + (6 * D + d_ff) * _F32               # biases + LN params
                  + 2 * tq_ * D * x.dtype.itemsize)     # output tile
        interm = (2 * tq_ * S * _F32                    # per-head scores + probs
                  + tq_ * d_ff * _F32                   # h1
                  + 4 * tq_ * D * _F32)                 # att acc, x1, ff, x2
        return int(1.25 * (blocks + interm)) + (4 << 20)

    tq = _pick_tile(S, q_tile_target)
    for _ in range(8):                                  # shrink tq until it fits
        if tq <= 8 or k2_budget(tq) <= cap:
            break
        tq = _pick_tile(S, max(8, tq // 2))
    n_q = S // tq

    rep = lambda shape: _spec(shape, lambda b, qi: tuple(0 for _ in shape),
                              single_buffer=True)
    in_specs = [
        pl.BlockSpec((None, tq, D), lambda b, qi: (b, qi, 0)),               # x tile
        pl.BlockSpec((None, None, H, tq, dh), lambda b, qi: (0, b, 0, qi, 0)),  # q tile
        pl.BlockSpec((None, None, H, S, dh), lambda b, qi: (1, b, 0, 0, 0)),    # k (full)
        pl.BlockSpec((None, None, H, S, dh), lambda b, qi: (2, b, 0, 0, 0)),    # v (full)
        rep((H, dh, D)), rep((1, D)),                                        # Wo, bo
        rep((1, D)), rep((1, D)),                                            # ln1 g, b
        rep((D, d_ff)), rep((1, d_ff)),                                      # W1, b1
        rep((d_ff, D)), rep((1, D)),                                         # W2, b2
        rep((1, D)), rep((1, D)),                                            # ln2 g, b
    ]

    flops = B * (4 * S * S * D + 2 * S * D * D + 4 * S * D * d_ff)
    kernel = functools.partial(attn_ffn_kernel, num_heads=H, head_dim=dh)
    out = pl.pallas_call(
        kernel,
        out_shape=jax.ShapeDtypeStruct((B, S, D), x.dtype),
        grid_spec=pltpu.PrefetchScalarGridSpec(
            num_scalar_prefetch=0,
            grid=(B, n_q),
            in_specs=in_specs,
            out_specs=pl.BlockSpec((1, tq, D), lambda b, qi: (b, qi, 0)),
        ),
        compiler_params=pltpu.CompilerParams(
            dimension_semantics=("parallel", "parallel"),
            vmem_limit_bytes=_vmem_limit(k2_budget(tq), cap)),
        cost_estimate=pl.CostEstimate(
            flops=int(flops),
            transcendentals=int(B * H * S * S + 6 * B * S),
            bytes_accessed=int(2 * B * S * D * 4 + 3 * B * S * D * 2
                               + D * D * 2 + 2 * D * d_ff * 2)),
    )(x, qkv_t, qkv_t, qkv_t,
      wo_h, params["bo"], params["g1"], params["be1"],
      w1, params["b_ff1"], w2, params["b_ff2"],
      params["g2"], params["be2"])
    return out


# ---------------------------------------------------------------------------
# Pure-JAX f32 reference (matches PyTorch semantics) for correctness checking
# ---------------------------------------------------------------------------
def reference_forward(x, params, *, num_heads):
    B, S, D = x.shape
    dh = D // num_heads

    def lin(y, w, b):
        return y @ w + b[0]

    q = lin(x, params["wq"], params["bq"]).reshape(B, S, num_heads, dh)
    k = lin(x, params["wk"], params["bk"]).reshape(B, S, num_heads, dh)
    v = lin(x, params["wv"], params["bv"]).reshape(B, S, num_heads, dh)
    s = jnp.einsum("bqhd,bkhd->bhqk", q, k) / math.sqrt(dh)
    p = jax.nn.softmax(s, axis=-1)
    att = jnp.einsum("bhqk,bkhd->bqhd", p, v).reshape(B, S, D)
    att = lin(att, params["wo"], params["bo"])

    def ln(y, g, b, eps=1e-5):
        mu = jnp.mean(y, -1, keepdims=True)
        var = jnp.mean((y - mu) ** 2, -1, keepdims=True)
        return (y - mu) * jax.lax.rsqrt(var + eps) * g[0] + b[0]

    x1 = ln(att + x, params["g1"], params["be1"])
    h = jnp.maximum(lin(x1, params["w_ff1"], params["b_ff1"]), 0.0)
    ff = lin(h, params["w_ff2"], params["b_ff2"])
    return ln(ff + x1, params["g2"], params["be2"])


if __name__ == "__main__":
    B, S, D, H, D_FF = 2, 8, 32, 4, 64

    key = jax.random.PRNGKey(0)
    ks = jax.random.split(key, 16)

    def init(k, shape, scale=0.1):
        return (scale * jax.random.normal(k, shape)).astype(jnp.float32)

    params = {
        "wq": init(ks[0], (D, D)),   "bq": init(ks[1], (1, D)),
        "wk": init(ks[2], (D, D)),   "bk": init(ks[3], (1, D)),
        "wv": init(ks[4], (D, D)),   "bv": init(ks[5], (1, D)),
        "wo": init(ks[6], (D, D)),   "bo": init(ks[7], (1, D)),
        "g1": jnp.ones((1, D), jnp.float32), "be1": jnp.zeros((1, D), jnp.float32),
        "w_ff1": init(ks[8], (D, D_FF)), "b_ff1": init(ks[9], (1, D_FF)),
        "w_ff2": init(ks[10], (D_FF, D)), "b_ff2": init(ks[11], (1, D)),
        "g2": jnp.ones((1, D), jnp.float32), "be2": jnp.zeros((1, D), jnp.float32),
    }

    x = jax.random.normal(ks[12], (B, S, D), dtype=jnp.float32)

    out = transformer_encoder_layer(x, params, num_heads=H)
    out = jax.block_until_ready(out)

    ref = reference_forward(x, params, num_heads=H)
    assert out.shape == (B, S, D)
    # bf16 MXU inputs with f32 accumulation + approx reciprocal -> loose tolerance
    assert jnp.allclose(out, ref, atol=5e-2, rtol=5e-2), "mismatch vs reference"

    print("KERNEL_OK")
</pallas_src>

<mosaic_0001>
module attributes {stable_mosaic.version = 11 : i64} {
  func.func @qkv_proj_kernel(%arg0: i32, %arg1: memref<16x32xf32, #tpu.memory_space<vmem>>, %arg2: memref<32x96xbf16, #tpu.memory_space<vmem>>, %arg3: memref<1x96xf32, #tpu.memory_space<vmem>>, %arg4: memref<16x96xbf16, #tpu.memory_space<vmem>>) attributes {dimension_semantics = [#tpu.dimension_semantics<parallel>], iteration_bounds = array<i64: 1>, scalar_prefetch = 0 : i64, scratch_operands = 0 : i64, tpu.core_type = #tpu.core_type<tc>, window_params = [{transform_indices = @transform_0, window_bounds = array<i64: 16, 32>}, {pipeline_mode = #tpu.pipeline_mode<synchronous>, transform_indices = @transform_1, window_bounds = array<i64: 32, 96>}, {pipeline_mode = #tpu.pipeline_mode<synchronous>, transform_indices = @transform_2, window_bounds = array<i64: 1, 96>}, {transform_indices = @transform_3, window_bounds = array<i64: 16, 96>}]} {
    %c0 = arith.constant 0 : index
    %c0_0 = arith.constant 0 : index
    %0 = vector.load %arg1[%c0, %c0_0] : memref<16x32xf32, #tpu.memory_space<vmem>>, vector<16x32xf32>
    %1 = arith.truncf %0 : vector<16x32xf32> to vector<16x32xbf16>
    %c0_1 = arith.constant 0 : index
    %c0_2 = arith.constant 0 : index
    %2 = vector.load %arg2[%c0_1, %c0_2] : memref<32x96xbf16, #tpu.memory_space<vmem>>, vector<32x96xbf16>
    %cst = arith.constant dense<0.000000e+00> : vector<16x96xf32>
    %3 = tpu.matmul %1, %2, %cst {dimension_numbers = #tpu.dot_dimension_numbers<[1], [0], [0], [1], [0, 0, 1, 1], [], []>} : vector<16x32xbf16>, vector<32x96xbf16>, vector<16x96xf32> -> vector<16x96xf32>
    %c0_3 = arith.constant 0 : index
    %c0_4 = arith.constant 0 : index
    %4 = vector.load %arg3[%c0_3, %c0_4] : memref<1x96xf32, #tpu.memory_space<vmem>>, vector<1x96xf32>
    %5 = vector.broadcast %4 : vector<1x96xf32> to vector<16x96xf32>
    %6 = arith.addf %3, %5 : vector<16x96xf32>
    %7 = arith.truncf %6 : vector<16x96xf32> to vector<16x96xbf16>
    %c0_5 = arith.constant 0 : index
    %c0_6 = arith.constant 0 : index
    %8 = vector.load %arg4[%c0_5, %c0_6] : memref<16x96xbf16, #tpu.memory_space<vmem>>, vector<16x96xbf16>
    tpu.vector_store %arg4[%c0_5, %c0_6], %7 {strides = array<i32>} : memref<16x96xbf16, #tpu.memory_space<vmem>>, vector<16x96xbf16>,
    return
  }
  func.func @transform_0(%arg0: i32) -> (i32, i32) {
    %c0_i32 = arith.constant 0 : i32
    %c0_i32_0 = arith.constant 0 : i32
    return %arg0, %c0_i32 : i32, i32
  }
  func.func @transform_1(%arg0: i32) -> (i32, i32) {
    %c0_i32 = arith.constant 0 : i32
    %c0_i32_0 = arith.constant 0 : i32
    %c0_i32_1 = arith.constant 0 : i32
    return %c0_i32, %c0_i32_0 : i32, i32
  }
  func.func @transform_2(%arg0: i32) -> (i32, i32) {
    %c0_i32 = arith.constant 0 : i32
    %c0_i32_0 = arith.constant 0 : i32
    %c0_i32_1 = arith.constant 0 : i32
    return %c0_i32, %c0_i32_0 : i32, i32
  }
  func.func @transform_3(%arg0: i32) -> (i32, i32) {
    %c0_i32 = arith.constant 0 : i32
    %c0_i32_0 = arith.constant 0 : i32
    return %arg0, %c0_i32 : i32, i32
  }
}

</mosaic_0001>

<llo_original>
// kernel: tpu_custom_call.1
$region0: #{tpu_custom_call.1}
  #allocation0 [shape = 'u32[]', space=smem, size = 0x4, offset = 0x4, fixed_abs, tag = 'smem constant byte address 0x4 - core index']
  #allocation1 [shape = 'u32[144,128]{1,0:T(1,128)}', space=vmem, size = 0x12000, scoped, tag = 'internal scratch']
  %s0 = inlined_call_operand.hbm [shape: f32[16,32], index: 0, kind: input, shape index: {}]
  %s1 = inlined_call_operand.hbm [shape: bf16[32,96], index: 1, kind: input, shape index: {}]
  %s2 = inlined_call_operand.vmem [shape: f32[1,96], index: 2, kind: input, shape index: {}]
  %s3 = inlined_call_operand.hbm [shape: bf16[16,96], index: 3, kind: output, shape index: {}]
  %s4 = sld [smem:[#allocation0]]
  $region30: #{tpu_custom_call.1} parent=0
    _
  %s6 = ssub.s32 1, %s4
  %s7 = scalar_select 0, %s6, %s4
  $region1: #{tpu_custom_call.1} parent=0
    #allocation2 [shape = 'u8[8192]{0}', space=vmem, size = 0x2000, scoped, tag = 'input window, operand 0, single buffered']
    #allocation3 [shape = 's32[1]{0}', space=sflag, size = 0x4, scoped, tag = 'scoped memory for tpu_custom_call.1']
    #allocation4 [shape = 's32[1]{0}', space=sflag, size = 0x4, scoped, tag = 'scoped memory for tpu_custom_call.1']
    #allocation5 [shape = 'u8[8192]{0}', space=vmem, size = 0x2000, scoped, tag = 'input window, operand 1, single buffered']
    #allocation6 [shape = 's32[1]{0}', space=sflag, size = 0x4, scoped, tag = 'scoped memory for tpu_custom_call.1']
    #allocation7 [shape = 'u8[4096]{0}', space=vmem, size = 0x1000, scoped, tag = 'output window, operand 0, single buffered']
    %8 = vsyncpa [#allocation3], 0
    %9 = vsyncpa [#allocation6], 0
    %10 = vsyncpa [#allocation4], 0
    // Predicated region
    $region2: #{tpu_custom_call.1} parent=1 // pred_check
      _
    $region3: #{tpu_custom_call.1} parent=1 // pred_check_branch
      %12 = sbr.rel (0) target = $region5
    $region4: #{tpu_custom_call.1} parent=1 // pred_region
      %s14 = ssub.s32 256, 256
      %15 = vsyncadd [#allocation3], %s14
      %s16 = sshll.u32 [#allocation2], 4
      %s17 = int_to_ptr.vmem [resolvable:$true] %s16
      %22 = dma.hbm_to_vmem [thread:$0]  %s0, 256, %s17, [#allocation3], 128, 128, 8
    $region5: #{tpu_custom_call.1} parent=1 // pred_fallthru
      _
    // Predicated region
    $region6: #{tpu_custom_call.1} parent=1 // pred_check
      _
    $region7: #{tpu_custom_call.1} parent=1 // pred_check_branch
      %24 = sbr.rel (0) target = $region9
    $region8: #{tpu_custom_call.1} parent=1 // pred_region
      %s26 = ssub.s32 256, 256
      %27 = vsyncadd [#allocation6], %s26
      %s28 = sshll.u32 [#allocation5], 4
      %s29 = int_to_ptr.vmem [resolvable:$true] %s28
      %34 = dma.hbm_to_vmem [thread:$0]  %s1, 256, %s29, [#allocation6], 64, 64, 4
    $region9: #{tpu_custom_call.1} parent=1 // pred_fallthru
      _
    // Predicated region
    $region10: #{tpu_custom_call.1} parent=1 // pred_check
      _
    $region11: #{tpu_custom_call.1} parent=1 // pred_check_branch
      %36 = sbr.rel (0) target = $region13
    $region12: #{tpu_custom_call.1} parent=1 // pred_region
      _
    $region13: #{tpu_custom_call.1} parent=1 // pred_fallthru
      _
    // Predicated region
    $region14: #{tpu_custom_call.1} parent=1 // pred_check
      _
    $region15: #{tpu_custom_call.1} parent=1 // pred_check_branch
      %38 = sbr.rel (0) target = $region17
    $region16: #{tpu_custom_call.1} parent=1 // pred_region
      %39 = dma.done [#allocation3], 256
    $region17: #{tpu_custom_call.1} parent=1 // pred_fallthru
      _
    // Predicated region
    $region18: #{tpu_custom_call.1} parent=1 // pred_check
      _
    $region19: #{tpu_custom_call.1} parent=1 // pred_check_branch
      %41 = sbr.rel (0) target = $region21
    $region20: #{tpu_custom_call.1} parent=1 // pred_region
      %42 = dma.done [#allocation6], 256
    $region21: #{tpu_custom_call.1} parent=1 // pred_fallthru
      _
    %v44 = vld [vmem:[#allocation2] sm:$0xff]
    %v45 = vld [vmem:[#allocation2 + $0x8] sm:$0xff]
    %v46 = vpack.c.bf16 %v45, %v44
    %v47 = vld [vmem:[#allocation5] sm:$0xf]
    %v48 = vld [vmem:[#allocation5 + $0x4] sm:$0xf]
    %v49 = vld [vmem:[#allocation5 + $0x8] sm:$0xf]
    %v50 = vld [vmem:[#allocation5 + $0xc] sm:$0xf]
    %v51 = vld [vmem:[%s2] sm:$0x1]
    %v53 = vlaneseq
    %v54 = vshrl.u32 %v53, 7
    %v55 = vsub.s32 0, %v54
    %v56 = vrot.slane %v51, %v55
    %v62 = vunpack.c.l.b16 %v47
    %v63 = vunpack.c.l.b16 %v48
    %v64 = vunpack.c.l.b16 %v49
    %v65 = vunpack.c.l.b16 %v50
    %v66 = vpack.c.b16 %v63, %v62
    %v67 = vpack.c.b16 %v65, %v64
    %vm70 = vcmask 261120
    %v72 = vsel %vm70, %v46, 0
    %74 = vmatprep.subr.bf16.mxu0 0
    %75 = vmatpush1.bf16.msra.mxu0 0
    %76 = vmatprep.subr.bf16.mxu0 0
    %77 = vmatpush1.bf16.msra.mxu0 0
    %78 = vmatprep.subr.bf16.mxu0 0
    %79 = vmatpush1.bf16.msra.mxu0 0
    %80 = vmatprep.subr.bf16.mxu0 0
    %81 = vmatpush1.bf16.msra.mxu0 0
    %82 = vmatprep.subr.bf16.mxu0 0
    %83 = vmatpush1.bf16.msra.mxu0 0
    %84 = vmatprep.subr.bf16.mxu0 0
    %85 = vmatpush1.bf16.msra.mxu0 0
    %86 = vmatprep.subr.bf16.mxu0 0
    %87 = vmatpush1.bf16.msra.mxu0 %v67
    %88 = vmatprep.subr.bf16.mxu0 0
    %89 = vmatpush1.bf16.msra.mxu0 %v66
    %90 = vmatprep.subr.bf16.mxu0 0
    %91 = vmatpush2.bf16.msra.mxu0 0
    %92 = vmatprep.subr.bf16.mxu0 0
    %93 = vmatpush2.bf16.msra.mxu0 0
    %94 = vmatprep.subr.bf16.mxu0 0
    %95 = vmatpush2.bf16.msra.mxu0 0
    %96 = vmatprep.subr.bf16.mxu0 0
    %97 = vmatpush2.bf16.msra.mxu0 0
    %98 = vmatprep.subr.bf16.mxu0 0
    %99 = vmatpush2.bf16.msra.mxu0 0
    %100 = vmatprep.subr.bf16.mxu0 0
    %101 = vmatpush2.bf16.msra.mxu0 0
    %102 = vmatprep.subr.bf16.mxu0 0
    %103 = vmatpush2.bf16.msra.mxu0 0
    %104 = vmatprep.subr.bf16.mxu0 0
    %105 = vmatpush2.bf16.msra.mxu0 0
    %106 = vmatprep.mubr.bf16.mxu0 0
    %107 = vmatmul.mubr.bf16.gmra.mxu0 %v72
    %v108 = vpop.f32.mrf.mxu0
    %v109 = vadd.f32 %v56, %v108
    %v110 = vpop.f32.mrf.mxu0
    %v111 = vpop.f32.mrf.mxu0
    %v112 = vadd.f32 %v56, %v111
    %v113 = vpop.f32.mrf.mxu0
    %114 = vdwg.mxu0
    %v115 = vpack.c.bf16 %v112, %v109
    %v117 = vunpack.c.l.b16 %v115
    %v118 = vunpack.c.h.b16 %v115
    %v119 = vpack.c.b16 %v117, %v117
    %v120 = vpack.c.b16 %v118, %v118
    %vm123 = vcmask 781312
    %124 = vst.msk [vmem:[#allocation7] sm:$0xf] %vm123, %v119
    %125 = vst.msk [vmem:[#allocation7 + $0x4] sm:$0xf] %vm123, %v120
    // Predicated region
    $region22: #{tpu_custom_call.1} parent=1 // pred_check
      _
    $region23: #{tpu_custom_call.1} parent=1 // pred_check_branch
      %127 = sbr.rel (0) target = $region25
    $region24: #{tpu_custom_call.1} parent=1 // pred_region
      %s129 = ssub.s32 128, 128
      %130 = vsyncadd [#allocation4], %s129
      %s131 = sshll.u32 [#allocation7], 4
      %s132 = int_to_ptr.vmem [resolvable:$true] %s131
      %137 = dma.vmem_to_hbm [thread:$0]  %s132, 128, %s3, [#allocation4], 64, 64, 4
    $region25: #{tpu_custom_call.1} parent=1 // pred_fallthru
      _
    // Predicated region
    $region26: #{tpu_custom_call.1} parent=1 // pred_check
      _
    $region27: #{tpu_custom_call.1} parent=1 // pred_check_branch
      %139 = sbr.rel (0) target = $region29
    $region28: #{tpu_custom_call.1} parent=1 // pred_region
      %140 = dma.done [#allocation4], 128
    $region29: #{tpu_custom_call.1} parent=1 // pred_fallthru
      _
    %141 = vsyncpa [#allocation3], 1
    %142 = vsyncpa [#allocation6], 1
    %143 = vsyncpa [#allocation4], 1

</llo_original>
